<compile_context>
chip_gen: v5e
topology: v5e:2x2
jax: 0.10.0
libtpu: 0.0.40
codegen_flags: <defaults>
</compile_context>

<pallas_src>
import math

import jax
import jax.numpy as jnp
from jax.experimental import pallas as pl
from jax.experimental.pallas import tpu as pltpu


def _round_up(n, m):
    return ((n + m - 1) // m) * m


def _supports_pipeline_mode():
    """Import-time probe: does BlockSpec accept pipeline_mode=pl.Buffered(n)?"""
    if not hasattr(pl, "Buffered"):
        return False
    try:
        pl.BlockSpec((8, 128), lambda i: (0, 0), pipeline_mode=pl.Buffered(1))
        return True
    except Exception:
        return False


_SINGLE_BUFFER_WEIGHTS = _supports_pipeline_mode()


def _vmem_cap_bytes():
    """Generation-aware ceiling for vmem_limit_bytes."""
    try:
        cap = int(getattr(pltpu.get_tpu_info(), "vmem_capacity_bytes", 0))
    except Exception:
        cap = 0
    if cap >= (100 << 20):          # v5e / v6e: 128 MiB VMEM per TensorCore
        return 96 << 20
    return 40 << 20                 # v7x (64 MiB per TC) or unknown: headroom


def _popdx_kernel(x_ref, w1t_ref, b1_ref, w2t_ref, b2_ref, yembt_ref,
                  o_ref, a_ref):
    # Stages 1+2 (two Linears + ReLU) run once per batch tile (at the first
    # label tile).  The activation is stored in the MXU compute dtype so the
    # f32 -> cdt cast happens exactly once; later label-tile steps only do
    # the third matmul.
    @pl.when(pl.program_id(1) == 0)
    def _():
        h = jnp.dot(x_ref[...], w1t_ref[...],
                    preferred_element_type=jnp.float32)
        h = h + b1_ref[...]                                   # f32 bias-add (VPU)
        z = jnp.dot(h.astype(w2t_ref.dtype), w2t_ref[...],
                    preferred_element_type=jnp.float32)
        z = z + b2_ref[...]
        a_ref[...] = jnp.maximum(z, 0.0).astype(a_ref.dtype)  # relu -> cdt, once

    # Stage 3: a @ y_emb^T tile; the only work on non-first label tiles.
    o_ref[...] = jnp.dot(a_ref[...], yembt_ref[...],
                         preferred_element_type=jnp.float32).astype(o_ref.dtype)


def prepare_params(w1, b1, w2, b2, y_emb, *, label_tile=512,
                   mxu_dtype=jnp.bfloat16):
    """One-time (model-load) weight preparation: transpose, cast, zero-pad.

    w1: (H, F)  b1: (H,)  w2: (E, H)  b2: (E,)  y_emb: (L, E)
    Zero-padding F/H/E/L to multiples of 128 is numerically neutral: padded
    rows/columns contribute exact zeros and padded outputs are sliced off.
    """
    H, F = w1.shape
    E, H2 = w2.shape
    L, E2 = y_emb.shape
    assert H2 == H and E2 == E
    cdt = jnp.dtype(mxu_dtype) if mxu_dtype is not None else jnp.dtype(w1.dtype)

    F_pad = _round_up(F, 128)
    H_pad = _round_up(H, 128)
    E_pad = _round_up(E, 128)
    # Label tile: multiple of 128 (lane-dense output stores), pad L up to it.
    TL = _round_up(min(label_tile, _round_up(L, 128)), 128)
    L_pad = _round_up(L, TL)

    w1t = jnp.zeros((F_pad, H_pad), dtype=cdt).at[:F, :H].set(
        jnp.asarray(w1, dtype=cdt).T)                         # (F_pad, H_pad)
    w2t = jnp.zeros((H_pad, E_pad), dtype=cdt).at[:H, :E].set(
        jnp.asarray(w2, dtype=cdt).T)                         # (H_pad, E_pad)
    yembt = jnp.zeros((E_pad, L_pad), dtype=cdt).at[:E, :L].set(
        jnp.asarray(y_emb, dtype=cdt).T)                      # (E_pad, L_pad)
    b1_2d = jnp.zeros((1, H_pad), dtype=jnp.float32).at[0, :H].set(
        jnp.asarray(b1, dtype=jnp.float32))
    b2_2d = jnp.zeros((1, E_pad), dtype=jnp.float32).at[0, :E].set(
        jnp.asarray(b2, dtype=jnp.float32))
    return dict(w1t=w1t, b1=b1_2d, w2t=w2t, b2=b2_2d, yembt=yembt,
                F=F, L=L, TL=TL, compute_dtype=cdt)


def popdx_apply(params, x, *, batch_tile=None, out_dtype=None,
                yemb_buffer_count=2):
    """x: (B, feature_num) -> (B, label_num)."""
    w1t, b1, w2t, b2, yembt = (params["w1t"], params["b1"], params["w2t"],
                               params["b2"], params["yembt"])
    F, L, TL, cdt = (params["F"], params["L"], params["TL"],
                     params["compute_dtype"])

    B = x.shape[0]
    assert x.shape[1] == F
    F_pad, H_pad = w1t.shape
    E_pad = w2t.shape[1]
    L_pad = yembt.shape[1]
    out_dtype = jnp.dtype(out_dtype) if out_dtype is not None else x.dtype
    itemsize = jnp.dtype(cdt).itemsize
    out_itemsize = jnp.dtype(out_dtype).itemsize

    # Batch tile: multiple of 16 for sub-32-bit sublane packing (8 for f32);
    # large by default so the (E,TL) y_emb^T stream is re-read few times.
    mult = 16 if itemsize < 4 else 8
    if batch_tile is None:
        batch_tile = 512 if itemsize < 4 else 256
    TB = _round_up(min(batch_tile, _round_up(B, mult)), mult)
    B_pad = _round_up(B, TB)
    nb = B_pad // TB
    # v7x megacore: give the "parallel" batch axis >= 2 steps when the batch
    # is big enough, so both TensorCores get work.
    if nb == 1 and B >= 2 * mult:
        TB = _round_up(pl.cdiv(B, 2), mult)
        B_pad = _round_up(B, TB)
        nb = B_pad // TB
    nl = L_pad // TL

    xp = jnp.asarray(x, dtype=cdt)
    if xp.shape != (B_pad, F_pad):
        xp = jnp.pad(xp, ((0, B_pad - B), (0, F_pad - F)))

    # BlockSpecs.  Weights / biases have a constant block index -> DMA'd once;
    # single-buffer them when this build supports pipeline_mode.
    if _SINGLE_BUFFER_WEIGHTS:
        def const_spec(shape):
            return pl.BlockSpec(shape, lambda i, l: (0, 0),
                                pipeline_mode=pl.Buffered(1))
        weight_bufs = 1
    else:
        def const_spec(shape):
            return pl.BlockSpec(shape, lambda i, l: (0, 0))
        weight_bufs = 2

    if yemb_buffer_count != 2 and _SINGLE_BUFFER_WEIGHTS:
        yembt_spec = pl.BlockSpec((E_pad, TL), lambda i, l: (0, l),
                                  pipeline_mode=pl.Buffered(yemb_buffer_count))
        y_bufs = yemb_buffer_count
    else:
        yembt_spec = pl.BlockSpec((E_pad, TL), lambda i, l: (0, l))
        y_bufs = 2

    # VMEM budget sized to the buffer counts actually in use.
    vmem_est = (
        weight_bufs * ((F_pad * H_pad + H_pad * E_pad) * itemsize
                       + (H_pad + E_pad) * 4)          # W1^T, W2^T, b1, b2
        + y_bufs * E_pad * TL * itemsize               # y_emb^T tiles
        + 2 * TB * F_pad * itemsize                    # x tile (double-buffered)
        + 2 * TB * TL * out_itemsize                   # output tile
        + TB * E_pad * itemsize                        # activation scratch (cdt)
        + 2 * TB * max(H_pad, E_pad, TL) * 4           # f32 matmul temporaries
    )
    vmem_limit = int(vmem_est * 1.4) + (4 << 20)
    vmem_limit = max(16 << 20, min(vmem_limit, _vmem_cap_bytes()))

    flops = (2 * B_pad * (F_pad * H_pad + H_pad * E_pad)
             + 2 * B_pad * E_pad * L_pad)
    bytes_accessed = (
        (F_pad * H_pad + H_pad * E_pad) * itemsize + (H_pad + E_pad) * 4
        + nb * E_pad * L_pad * itemsize                # y_emb^T re-read per batch tile
        + B_pad * F_pad * itemsize
        + B_pad * L_pad * out_itemsize)
    cost = pl.CostEstimate(flops=flops, transcendentals=0,
                           bytes_accessed=bytes_accessed)

    out_padded = pl.pallas_call(
        _popdx_kernel,
        out_shape=jax.ShapeDtypeStruct((B_pad, L_pad), out_dtype),
        grid_spec=pltpu.PrefetchScalarGridSpec(
            num_scalar_prefetch=0,
            grid=(nb, nl),
            in_specs=[
                # x tile: constant across l -> DMA skipped on label steps.
                pl.BlockSpec((TB, F_pad), lambda i, l: (i, 0)),
                const_spec((F_pad, H_pad)),   # W1^T (resident)
                const_spec((1, H_pad)),       # b1
                const_spec((H_pad, E_pad)),   # W2^T (resident)
                const_spec((1, E_pad)),       # b2
                yembt_spec,                   # y_emb^T label tile (streams)
            ],
            out_specs=pl.BlockSpec((TB, TL), lambda i, l: (i, l)),
            scratch_shapes=[pltpu.VMEM((TB, E_pad), cdt)],
        ),
        compiler_params=pltpu.CompilerParams(
            dimension_semantics=("parallel", "arbitrary"),
            vmem_limit_bytes=vmem_limit,
        ),
        cost_estimate=cost,
    )(xp, w1t, b1, w2t, b2, yembt)

    return out_padded[:B, :L]


def popdx_forward(x, w1, b1, w2, b2, y_emb, *, mxu_dtype=jnp.bfloat16,
                  batch_tile=None):
    """Convenience one-shot wrapper (prefer prepare_params + popdx_apply)."""
    params = prepare_params(w1, b1, w2, b2, y_emb, mxu_dtype=mxu_dtype)
    return popdx_apply(params, x, batch_tile=batch_tile)


def init_params(key, feature_num, hidden_size, emb_dim, label_num,
                dtype=jnp.float32):
    """Deterministic synthetic params. Linear weights use kaiming_normal_
    (fan_in, gain=sqrt(2)), matching POPDxModel.initialize()."""
    k1, k2, k3, k4, k5 = jax.random.split(key, 5)
    std1 = math.sqrt(2.0 / feature_num)
    std2 = math.sqrt(2.0 / hidden_size)
    w1 = (jax.random.normal(k1, (hidden_size, feature_num)) * std1).astype(dtype)
    w2 = (jax.random.normal(k2, (emb_dim, hidden_size)) * std2).astype(dtype)
    b1 = (jax.random.normal(k3, (hidden_size,)) * 0.01).astype(dtype)
    b2 = (jax.random.normal(k4, (emb_dim,)) * 0.01).astype(dtype)
    y_emb = jax.random.normal(k5, (label_num, emb_dim)).astype(dtype)
    return w1, b1, w2, b2, y_emb


def reference_forward(x, w1, b1, w2, b2, y_emb):
    p = jax.lax.Precision.HIGHEST
    h = jnp.dot(x, w1.T, precision=p) + b1
    z = jnp.dot(h, w2.T, precision=p) + b2
    a = jnp.maximum(z, 0.0)
    return jnp.dot(a, y_emb.T, precision=p)


if __name__ == "__main__":
    # Small shapes consistent with the module's forward.
    batch = 8
    feature_num = 32
    hidden_size = 32
    emb_dim = 16       # y_emb.shape[1]
    label_num = 24     # y_emb.shape[0]

    key = jax.random.PRNGKey(0)
    kx, kp = jax.random.split(key)
    x = jax.random.normal(kx, (batch, feature_num), dtype=jnp.float32)
    w1, b1, w2, b2, y_emb = init_params(
        kp, feature_num, hidden_size, emb_dim, label_num)

    ref = jax.block_until_ready(reference_forward(x, w1, b1, w2, b2, y_emb))
    ref_scale = float(jnp.max(jnp.abs(ref))) + 1e-6

    # f32 MXU path: close match to the high-precision reference.
    params_f32 = prepare_params(w1, b1, w2, b2, y_emb, mxu_dtype=jnp.float32)
    out_f32 = jax.block_until_ready(popdx_apply(params_f32, x))
    assert out_f32.shape == (batch, label_num)
    rel_f32 = float(jnp.max(jnp.abs(out_f32 - ref))) / ref_scale
    assert rel_f32 < 1e-3, f"f32 path rel err {rel_f32} vs reference"

    # Default bf16 MXU path (fast path on v5e/v6e/v7x): f32 accumulation,
    # looser tolerance.
    params_bf16 = prepare_params(w1, b1, w2, b2, y_emb)
    out_bf16 = jax.block_until_ready(popdx_apply(params_bf16, x))
    assert out_bf16.shape == (batch, label_num)
    rel_bf16 = float(jnp.max(jnp.abs(out_bf16 - ref))) / ref_scale
    assert rel_bf16 < 5e-2, f"bf16 path rel err {rel_bf16} vs reference"

    print("KERNEL_OK")
</pallas_src>

<mosaic_0001>
module attributes {stable_mosaic.version = 11 : i64} {
  func.func @_popdx_kernel(%arg0: i32, %arg1: i32, %arg2: memref<8x128xf32, #tpu.memory_space<vmem>>, %arg3: memref<128x128xf32, #tpu.memory_space<vmem>>, %arg4: memref<1x128xf32, #tpu.memory_space<vmem>>, %arg5: memref<128x128xf32, #tpu.memory_space<vmem>>, %arg6: memref<1x128xf32, #tpu.memory_space<vmem>>, %arg7: memref<128x128xf32, #tpu.memory_space<vmem>>, %arg8: memref<8x128xf32, #tpu.memory_space<vmem>>, %arg9: memref<8x128xf32, #tpu.memory_space<vmem>>) attributes {dimension_semantics = [#tpu.dimension_semantics<parallel>, #tpu.dimension_semantics<arbitrary>], iteration_bounds = array<i64: 1, 1>, scalar_prefetch = 0 : i64, scratch_operands = 1 : i64, tpu.core_type = #tpu.core_type<tc>, window_params = [{transform_indices = @transform_0, window_bounds = array<i64: 8, 128>}, {pipeline_mode = #tpu.pipeline_mode<synchronous>, transform_indices = @transform_1, window_bounds = array<i64: 128, 128>}, {pipeline_mode = #tpu.pipeline_mode<synchronous>, transform_indices = @transform_2, window_bounds = array<i64: 1, 128>}, {pipeline_mode = #tpu.pipeline_mode<synchronous>, transform_indices = @transform_3, window_bounds = array<i64: 128, 128>}, {pipeline_mode = #tpu.pipeline_mode<synchronous>, transform_indices = @transform_4, window_bounds = array<i64: 1, 128>}, {transform_indices = @transform_5, window_bounds = array<i64: 128, 128>}, {transform_indices = @transform_6, window_bounds = array<i64: 8, 128>}]} {
    %c0_i32 = arith.constant 0 : i32
    %0 = arith.cmpi eq, %arg1, %c0_i32 : i32
    %1 = arith.extui %0 : i1 to i32
    %c0_i32_0 = arith.constant 0 : i32
    %2 = arith.cmpi ne, %1, %c0_i32_0 : i32
    scf.if %2 {
      %c0_6 = arith.constant 0 : index
      %c0_7 = arith.constant 0 : index
      %7 = vector.load %arg2[%c0_6, %c0_7] : memref<8x128xf32, #tpu.memory_space<vmem>>, vector<8x128xf32>
      %c0_8 = arith.constant 0 : index
      %c0_9 = arith.constant 0 : index
      %8 = vector.load %arg3[%c0_8, %c0_9] : memref<128x128xf32, #tpu.memory_space<vmem>>, vector<128x128xf32>
      %cst_10 = arith.constant dense<0.000000e+00> : vector<8x128xf32>
      %9 = tpu.matmul %7, %8, %cst_10 {dimension_numbers = #tpu.dot_dimension_numbers<[1], [0], [0], [1], [0, 0, 1, 1], [], []>} : vector<8x128xf32>, vector<128x128xf32>, vector<8x128xf32> -> vector<8x128xf32>
      %c0_11 = arith.constant 0 : index
      %c0_12 = arith.constant 0 : index
      %10 = vector.load %arg4[%c0_11, %c0_12] : memref<1x128xf32, #tpu.memory_space<vmem>>, vector<1x128xf32>
      %11 = vector.broadcast %10 : vector<1x128xf32> to vector<8x128xf32>
      %12 = arith.addf %9, %11 : vector<8x128xf32>
      %c0_13 = arith.constant 0 : index
      %c0_14 = arith.constant 0 : index
      %13 = vector.load %arg5[%c0_13, %c0_14] : memref<128x128xf32, #tpu.memory_space<vmem>>, vector<128x128xf32>
      %cst_15 = arith.constant dense<0.000000e+00> : vector<8x128xf32>
      %14 = tpu.matmul %12, %13, %cst_15 {dimension_numbers = #tpu.dot_dimension_numbers<[1], [0], [0], [1], [0, 0, 1, 1], [], []>} : vector<8x128xf32>, vector<128x128xf32>, vector<8x128xf32> -> vector<8x128xf32>
      %c0_16 = arith.constant 0 : index
      %c0_17 = arith.constant 0 : index
      %15 = vector.load %arg6[%c0_16, %c0_17] : memref<1x128xf32, #tpu.memory_space<vmem>>, vector<1x128xf32>
      %16 = vector.broadcast %15 : vector<1x128xf32> to vector<8x128xf32>
      %17 = arith.addf %14, %16 : vector<8x128xf32>
      %cst_18 = arith.constant 0.000000e+00 : f32
      %18 = vector.broadcast %cst_18 : f32 to vector<8x128xf32>
      %19 = arith.maximumf %17, %18 : vector<8x128xf32>
      %c0_19 = arith.constant 0 : index
      %c0_20 = arith.constant 0 : index
      %20 = vector.load %arg9[%c0_19, %c0_20] : memref<8x128xf32, #tpu.memory_space<vmem>>, vector<8x128xf32>
      tpu.vector_store %arg9[%c0_19, %c0_20], %19 {strides = array<i32>} : memref<8x128xf32, #tpu.memory_space<vmem>>, vector<8x128xf32>,
    } else {
    }
    %c0 = arith.constant 0 : index
    %c0_1 = arith.constant 0 : index
    %3 = vector.load %arg9[%c0, %c0_1] : memref<8x128xf32, #tpu.memory_space<vmem>>, vector<8x128xf32>
    %c0_2 = arith.constant 0 : index
    %c0_3 = arith.constant 0 : index
    %4 = vector.load %arg7[%c0_2, %c0_3] : memref<128x128xf32, #tpu.memory_space<vmem>>, vector<128x128xf32>
    %cst = arith.constant dense<0.000000e+00> : vector<8x128xf32>
    %5 = tpu.matmul %3, %4, %cst {dimension_numbers = #tpu.dot_dimension_numbers<[1], [0], [0], [1], [0, 0, 1, 1], [], []>} : vector<8x128xf32>, vector<128x128xf32>, vector<8x128xf32> -> vector<8x128xf32>
    %c0_4 = arith.constant 0 : index
    %c0_5 = arith.constant 0 : index
    %6 = vector.load %arg8[%c0_4, %c0_5] : memref<8x128xf32, #tpu.memory_space<vmem>>, vector<8x128xf32>
    tpu.vector_store %arg8[%c0_4, %c0_5], %5 {strides = array<i32>} : memref<8x128xf32, #tpu.memory_space<vmem>>, vector<8x128xf32>,
    return
  }
  func.func @transform_0(%arg0: i32, %arg1: i32) -> (i32, i32) {
    %c0_i32 = arith.constant 0 : i32
    %c0_i32_0 = arith.constant 0 : i32
    return %arg0, %c0_i32 : i32, i32
  }
  func.func @transform_1(%arg0: i32, %arg1: i32) -> (i32, i32) {
    %c0_i32 = arith.constant 0 : i32
    %c0_i32_0 = arith.constant 0 : i32
    %c0_i32_1 = arith.constant 0 : i32
    return %c0_i32, %c0_i32_0 : i32, i32
  }
  func.func @transform_2(%arg0: i32, %arg1: i32) -> (i32, i32) {
    %c0_i32 = arith.constant 0 : i32
    %c0_i32_0 = arith.constant 0 : i32
    %c0_i32_1 = arith.constant 0 : i32
    return %c0_i32, %c0_i32_0 : i32, i32
  }
  func.func @transform_3(%arg0: i32, %arg1: i32) -> (i32, i32) {
    %c0_i32 = arith.constant 0 : i32
    %c0_i32_0 = arith.constant 0 : i32
    %c0_i32_1 = arith.constant 0 : i32
    return %c0_i32, %c0_i32_0 : i32, i32
  }
  func.func @transform_4(%arg0: i32, %arg1: i32) -> (i32, i32) {
    %c0_i32 = arith.constant 0 : i32
    %c0_i32_0 = arith.constant 0 : i32
    %c0_i32_1 = arith.constant 0 : i32
    return %c0_i32, %c0_i32_0 : i32, i32
  }
  func.func @transform_5(%arg0: i32, %arg1: i32) -> (i32, i32) {
    %c0_i32 = arith.constant 0 : i32
    %c0_i32_0 = arith.constant 0 : i32
    return %c0_i32, %arg1 : i32, i32
  }
  func.func @transform_6(%arg0: i32, %arg1: i32) -> (i32, i32) {
    %c0_i32 = arith.constant 0 : i32
    return %arg0, %arg1 : i32, i32
  }
}

</mosaic_0001>

<llo_original>
// kernel: tpu_custom_call.1
$region0: #{tpu_custom_call.1}
  #allocation0 [shape = 'u32[]', space=smem, size = 0x4, offset = 0x4, fixed_abs, tag = 'smem constant byte address 0x4 - core index']
  #allocation1 [shape = 'u32[72,128]{1,0:T(1,128)}', space=vmem, size = 0x9000, scoped, tag = 'internal scratch']
  #allocation2 [shape = 'f32[8,128]{1,0:T(8,128)}', space=vmem, size = 0x1000, scoped, tag = 'scratch operand']
  %s0 = inlined_call_operand.hbm [shape: f32[8,128], index: 0, kind: input, shape index: {}]
  %s1 = inlined_call_operand.hbm [shape: f32[128,128], index: 1, kind: input, shape index: {}]
  %s2 = inlined_call_operand.vmem [shape: f32[1,128], index: 2, kind: input, shape index: {}]
  %s3 = inlined_call_operand.hbm [shape: f32[128,128], index: 3, kind: input, shape index: {}]
  %s4 = inlined_call_operand.vmem [shape: f32[1,128], index: 4, kind: input, shape index: {}]
  %s5 = inlined_call_operand.hbm [shape: f32[128,128], index: 5, kind: input, shape index: {}]
  %s6 = inlined_call_operand.hbm [shape: f32[8,128], index: 6, kind: output, shape index: {}]
  %s7 = sld [smem:[#allocation0]]
  $region54: #{tpu_custom_call.1} parent=0
    _
  %s9 = ssub.s32 1, %s7
  %s10 = scalar_select 0, %s9, %s7
  $region1: #{tpu_custom_call.1} parent=0
    #allocation3 [shape = 'u8[4096]{0}', space=vmem, size = 0x1000, scoped, tag = 'input window, operand 0, single buffered']
    #allocation4 [shape = 's32[1]{0}', space=sflag, size = 0x4, scoped, tag = 'scoped memory for tpu_custom_call.1']
    #allocation5 [shape = 's32[1]{0}', space=sflag, size = 0x4, scoped, tag = 'scoped memory for tpu_custom_call.1']
    #allocation6 [shape = 'u8[65536]{0}', space=vmem, size = 0x10000, scoped, tag = 'input window, operand 1, single buffered']
    #allocation7 [shape = 's32[1]{0}', space=sflag, size = 0x4, scoped, tag = 'scoped memory for tpu_custom_call.1']
    #allocation8 [shape = 'u8[65536]{0}', space=vmem, size = 0x10000, scoped, tag = 'input window, operand 3, single buffered']
    #allocation9 [shape = 'u8[65536]{0}', space=vmem, size = 0x10000, scoped, tag = 'input window, operand 5, single buffered']
    #allocation10 [shape = 's32[1]{0}', space=sflag, size = 0x4, scoped, tag = 'scoped memory for tpu_custom_call.1']
    #allocation11 [shape = 'u8[4096]{0}', space=vmem, size = 0x1000, scoped, tag = 'output window, operand 0, single buffered']
    %11 = vsyncpa [#allocation4], 0
    %12 = vsyncpa [#allocation7], 0
    %13 = vsyncpa [#allocation10], 0
    %14 = vsyncpa [#allocation5], 0
    // Predicated region
    $region2: #{tpu_custom_call.1} parent=1 // pred_check
      _
    $region3: #{tpu_custom_call.1} parent=1 // pred_check_branch
      %16 = sbr.rel (0) target = $region5
    $region4: #{tpu_custom_call.1} parent=1 // pred_region
      %18 = vsyncadd [#allocation4], 0
      %s20 = sshll.u32 %s0, 4
      %s21 = int_to_ptr.hbm [resolvable:$true] %s20
      %s22 = sshll.u32 [#allocation3], 4
      %s23 = int_to_ptr.vmem [resolvable:$true] %s22
      %25 = dma.hbm_to_vmem [thread:$0]  %s21, 128, %s23, [#allocation4]
    $region5: #{tpu_custom_call.1} parent=1 // pred_fallthru
      _
    // Predicated region
    $region6: #{tpu_custom_call.1} parent=1 // pred_check
      _
    $region7: #{tpu_custom_call.1} parent=1 // pred_check_branch
      %27 = sbr.rel (0) target = $region9
    $region8: #{tpu_custom_call.1} parent=1 // pred_region
      %29 = vsyncadd [#allocation7], 0
      %s30 = sshll.u32 %s1, 4
      %s31 = int_to_ptr.hbm [resolvable:$true] %s30
      %s32 = sshll.u32 [#allocation6], 4
      %s33 = int_to_ptr.vmem [resolvable:$true] %s32
      %38 = dma.hbm_to_vmem [thread:$0]  %s31, 2048, %s33, [#allocation7], 128, 128, 8
    $region9: #{tpu_custom_call.1} parent=1 // pred_fallthru
      _
    // Predicated region
    $region10: #{tpu_custom_call.1} parent=1 // pred_check
      _
    $region11: #{tpu_custom_call.1} parent=1 // pred_check_branch
      %40 = sbr.rel (0) target = $region13
    $region12: #{tpu_custom_call.1} parent=1 // pred_region
      _
    $region13: #{tpu_custom_call.1} parent=1 // pred_fallthru
      _
    // Predicated region
    $region14: #{tpu_custom_call.1} parent=1 // pred_check
      _
    $region15: #{tpu_custom_call.1} parent=1 // pred_check_branch
      %42 = sbr.rel (0) target = $region17
    $region16: #{tpu_custom_call.1} parent=1 // pred_region
      %44 = vsyncadd [#allocation7], 0
      %s45 = sshll.u32 %s3, 4
      %s46 = int_to_ptr.hbm [resolvable:$true] %s45
      %s47 = sshll.u32 [#allocation8], 4
      %s48 = int_to_ptr.vmem [resolvable:$true] %s47
      %53 = dma.hbm_to_vmem [thread:$0]  %s46, 2048, %s48, [#allocation7], 128, 128, 8
    $region17: #{tpu_custom_call.1} parent=1 // pred_fallthru
      _
    // Predicated region
    $region18: #{tpu_custom_call.1} parent=1 // pred_check
      _
    $region19: #{tpu_custom_call.1} parent=1 // pred_check_branch
      %55 = sbr.rel (0) target = $region21
    $region20: #{tpu_custom_call.1} parent=1 // pred_region
      _
    $region21: #{tpu_custom_call.1} parent=1 // pred_fallthru
      _
    // Predicated region
    $region22: #{tpu_custom_call.1} parent=1 // pred_check
      _
    $region23: #{tpu_custom_call.1} parent=1 // pred_check_branch
      %57 = sbr.rel (0) target = $region25
    $region24: #{tpu_custom_call.1} parent=1 // pred_region
      %59 = vsyncadd [#allocation10], 0
      %s60 = sshll.u32 %s5, 4
      %s61 = int_to_ptr.hbm [resolvable:$true] %s60
      %s62 = sshll.u32 [#allocation9], 4
      %s63 = int_to_ptr.vmem [resolvable:$true] %s62
      %68 = dma.hbm_to_vmem [thread:$0]  %s61, 2048, %s63, [#allocation10], 128, 128, 8
    $region25: #{tpu_custom_call.1} parent=1 // pred_fallthru
      _
    // Predicated region
    $region26: #{tpu_custom_call.1} parent=1 // pred_check
      _
    $region27: #{tpu_custom_call.1} parent=1 // pred_check_branch
      %70 = sbr.rel (0) target = $region29
    $region28: #{tpu_custom_call.1} parent=1 // pred_region
      %72 = dma.done [#allocation4], 128
    $region29: #{tpu_custom_call.1} parent=1 // pred_fallthru
      _
    // Predicated region
    $region30: #{tpu_custom_call.1} parent=1 // pred_check
      _
    $region31: #{tpu_custom_call.1} parent=1 // pred_check_branch
      %74 = sbr.rel (0) target = $region33
    $region32: #{tpu_custom_call.1} parent=1 // pred_region
      %76 = dma.done [#allocation7], 2048
    $region33: #{tpu_custom_call.1} parent=1 // pred_fallthru
      _
    // Predicated region
    $region34: #{tpu_custom_call.1} parent=1 // pred_check
      _
    $region35: #{tpu_custom_call.1} parent=1 // pred_check_branch
      %78 = sbr.rel (0) target = $region37
    $region36: #{tpu_custom_call.1} parent=1 // pred_region
      %80 = dma.done [#allocation7], 2048
    $region37: #{tpu_custom_call.1} parent=1 // pred_fallthru
      _
    // Predicated region
    $region38: #{tpu_custom_call.1} parent=1 // pred_check
      _
    $region39: #{tpu_custom_call.1} parent=1 // pred_check_branch
      %82 = sbr.rel (0) target = $region41
    $region40: #{tpu_custom_call.1} parent=1 // pred_region
      %84 = dma.done [#allocation10], 2048
    $region41: #{tpu_custom_call.1} parent=1 // pred_fallthru
      _
    %p85 = scmp.eq.s32.totalorder 0, 0
    // Predicated region
    $region42: #{tpu_custom_call.1} parent=1 // pred_check
      %p86 = pneg %p85
    $region43: #{tpu_custom_call.1} parent=1 // pred_check_branch
      %88 = sbr.rel (%p86) target = $region45
    $region44: #{tpu_custom_call.1} parent=1 // pred_region
      %v89 = vld [vmem:[#allocation3] sm:$0xff]
      %v90 = vld [vmem:[#allocation6] sm:$0xff]
      %v91 = vld [vmem:[#allocation6 + $0x8] sm:$0xff]
      %v92 = vld [vmem:[#allocation6 + $0x10] sm:$0xff]
      %v93 = vld [vmem:[#allocation6 + $0x18] sm:$0xff]
      %v94 = vld [vmem:[#allocation6 + $0x20] sm:$0xff]
      %v95 = vld [vmem:[#allocation6 + $0x28] sm:$0xff]
      %v96 = vld [vmem:[#allocation6 + $0x30] sm:$0xff]
      %v97 = vld [vmem:[#allocation6 + $0x38] sm:$0xff]
      %v98 = vld [vmem:[#allocation6 + $0x40] sm:$0xff]
      %v99 = vld [vmem:[#allocation6 + $0x48] sm:$0xff]
      %v100 = vld [vmem:[#allocation6 + $0x50] sm:$0xff]
      %v101 = vld [vmem:[#allocation6 + $0x58] sm:$0xff]
      %v102 = vld [vmem:[#allocation6 + $0x60] sm:$0xff]
      %v103 = vld [vmem:[#allocation6 + $0x68] sm:$0xff]
      %v104 = vld [vmem:[#allocation6 + $0x70] sm:$0xff]
      %v105 = vld [vmem:[#allocation6 + $0x78] sm:$0xff]
      %v106 = vld [vmem:[%s2] sm:$0x1]
      %v108 = vperm.slane %v106, 0
      %110 = vmatpush.msra.mxu0 %v105
      %111 = vmatpush.msra.mxu0 %v104
      %112 = vmatpush.msra.mxu0 %v103
      %113 = vmatpush.msra.mxu0 %v102
      %114 = vmatpush.msra.mxu0 %v101
      %115 = vmatpush.msra.mxu0 %v100
      %116 = vmatpush.msra.mxu0 %v99
      %117 = vmatpush.msra.mxu0 %v98
      %118 = vmatpush.msra.mxu0 %v97
      %119 = vmatpush.msra.mxu0 %v96
      %120 = vmatpush.msra.mxu0 %v95
      %121 = vmatpush.msra.mxu0 %v94
      %122 = vmatpush.msra.mxu0 %v93
      %123 = vmatpush.msra.mxu0 %v92
      %124 = vmatpush.msra.mxu0 %v91
      %125 = vmatpush.msra.mxu0 %v90
      %126 = vmatmul.f32.gmra.mxu0 %v89
      %v127 = vpop.f32.mrf.mxu0
      %v128 = vadd.f32 %v108, %v127
      %129 = vdwg.mxu0
      %v130 = vld [vmem:[#allocation8] sm:$0xff]
      %v131 = vld [vmem:[#allocation8 + $0x8] sm:$0xff]
      %v132 = vld [vmem:[#allocation8 + $0x10] sm:$0xff]
      %v133 = vld [vmem:[#allocation8 + $0x18] sm:$0xff]
      %v134 = vld [vmem:[#allocation8 + $0x20] sm:$0xff]
      %v135 = vld [vmem:[#allocation8 + $0x28] sm:$0xff]
      %v136 = vld [vmem:[#allocation8 + $0x30] sm:$0xff]
      %v137 = vld [vmem:[#allocation8 + $0x38] sm:$0xff]
      %v138 = vld [vmem:[#allocation8 + $0x40] sm:$0xff]
      %v139 = vld [vmem:[#allocation8 + $0x48] sm:$0xff]
      %v140 = vld [vmem:[#allocation8 + $0x50] sm:$0xff]
      %v141 = vld [vmem:[#allocation8 + $0x58] sm:$0xff]
      %v142 = vld [vmem:[#allocation8 + $0x60] sm:$0xff]
      %v143 = vld [vmem:[#allocation8 + $0x68] sm:$0xff]
      %v144 = vld [vmem:[#allocation8 + $0x70] sm:$0xff]
      %v145 = vld [vmem:[#allocation8 + $0x78] sm:$0xff]
      %v146 = vld [vmem:[%s4] sm:$0x1]
      %v148 = vperm.slane %v146, 0
      %150 = vmatpush.msra.mxu0 %v145
      %151 = vmatpush.msra.mxu0 %v144
      %152 = vmatpush.msra.mxu0 %v143
      %153 = vmatpush.msra.mxu0 %v142
      %154 = vmatpush.msra.mxu0 %v141
      %155 = vmatpush.msra.mxu0 %v140
      %156 = vmatpush.msra.mxu0 %v139
      %157 = vmatpush.msra.mxu0 %v138
      %158 = vmatpush.msra.mxu0 %v137
      %159 = vmatpush.msra.mxu0 %v136
      %160 = vmatpush.msra.mxu0 %v135
      %161 = vmatpush.msra.mxu0 %v134
      %162 = vmatpush.msra.mxu0 %v133
      %163 = vmatpush.msra.mxu0 %v132
      %164 = vmatpush.msra.mxu0 %v131
      %165 = vmatpush.msra.mxu0 %v130
      %166 = vmatmul.f32.gmra.mxu0 %v128
      %v167 = vpop.f32.mrf.mxu0
      %v168 = vadd.f32 %v148, %v167
      %169 = vdwg.mxu0
      %v170 = vmax.f32 %v168, 0.0
      %171 = vst [vmem:[#allocation2] sm:$0xff] %v170
    $region45: #{tpu_custom_call.1} parent=1 // pred_fallthru
      _
    %v172 = vld [vmem:[#allocation2] sm:$0xff]
    %v173 = vld [vmem:[#allocation9] sm:$0xff]
    %v174 = vld [vmem:[#allocation9 + $0x8] sm:$0xff]
    %v175 = vld [vmem:[#allocation9 + $0x10] sm:$0xff]
    %v176 = vld [vmem:[#allocation9 + $0x18] sm:$0xff]
    %v177 = vld [vmem:[#allocation9 + $0x20] sm:$0xff]
    %v178 = vld [vmem:[#allocation9 + $0x28] sm:$0xff]
    %v179 = vld [vmem:[#allocation9 + $0x30] sm:$0xff]
    %v180 = vld [vmem:[#allocation9 + $0x38] sm:$0xff]
    %v181 = vld [vmem:[#allocation9 + $0x40] sm:$0xff]
    %v182 = vld [vmem:[#allocation9 + $0x48] sm:$0xff]
    %v183 = vld [vmem:[#allocation9 + $0x50] sm:$0xff]
    %v184 = vld [vmem:[#allocation9 + $0x58] sm:$0xff]
    %v185 = vld [vmem:[#allocation9 + $0x60] sm:$0xff]
    %v186 = vld [vmem:[#allocation9 + $0x68] sm:$0xff]
    %v187 = vld [vmem:[#allocation9 + $0x70] sm:$0xff]
    %v188 = vld [vmem:[#allocation9 + $0x78] sm:$0xff]
    %189 = vmatpush.msra.mxu0 %v188
    %190 = vmatpush.msra.mxu0 %v187
    %191 = vmatpush.msra.mxu0 %v186
    %192 = vmatpush.msra.mxu0 %v185
    %193 = vmatpush.msra.mxu0 %v184
    %194 = vmatpush.msra.mxu0 %v183
    %195 = vmatpush.msra.mxu0 %v182
    %196 = vmatpush.msra.mxu0 %v181
    %197 = vmatpush.msra.mxu0 %v180
    %198 = vmatpush.msra.mxu0 %v179
    %199 = vmatpush.msra.mxu0 %v178
    %200 = vmatpush.msra.mxu0 %v177
    %201 = vmatpush.msra.mxu0 %v176
    %202 = vmatpush.msra.mxu0 %v175
    %203 = vmatpush.msra.mxu0 %v174
    %204 = vmatpush.msra.mxu0 %v173
    %205 = vmatmul.f32.gmra.mxu0 %v172
    %v206 = vpop.f32.mrf.mxu0
    %v207 = vadd.f32 0.0, %v206
    %208 = vdwg.mxu0
    %209 = vst [vmem:[#allocation11] sm:$0xff] %v207
    // Predicated region
    $region46: #{tpu_custom_call.1} parent=1 // pred_check
      _
    $region47: #{tpu_custom_call.1} parent=1 // pred_check_branch
      %211 = sbr.rel (0) target = $region49
    $region48: #{tpu_custom_call.1} parent=1 // pred_region
      %213 = vsyncadd [#allocation5], 0
      %s215 = sshll.u32 [#allocation11], 4
      %s216 = int_to_ptr.vmem [resolvable:$true] %s215
      %s217 = sshll.u32 %s6, 4
      %s218 = int_to_ptr.hbm [resolvable:$true] %s217
      %220 = dma.vmem_to_hbm [thread:$0]  %s216, 128, %s218, [#allocation5]
    $region49: #{tpu_custom_call.1} parent=1 // pred_fallthru
      _
    // Predicated region
    $region50: #{tpu_custom_call.1} parent=1 // pred_check
      _
    $region51: #{tpu_custom_call.1} parent=1 // pred_check_branch
      %222 = sbr.rel (0) target = $region53
    $region52: #{tpu_custom_call.1} parent=1 // pred_region
      %224 = dma.done [#allocation5], 128
    $region53: #{tpu_custom_call.1} parent=1 // pred_fallthru
      _
    %225 = vsyncpa [#allocation4], 1
    %226 = vsyncpa [#allocation7], 1
    %227 = vsyncpa [#allocation10], 1
    %228 = vsyncpa [#allocation5], 1

</llo_original>
